<compile_context>
chip_gen: v7x
topology: tpu7x:2x2x1
jax: 0.10.0
libtpu: 0.0.40
codegen_flags: <defaults>
</compile_context>

<pallas_src>
import jax
import jax.numpy as jnp
from jax.experimental import pallas as pl
from jax.experimental.pallas import tpu as pltpu

# ----------------------------------------------------------------------------
# Static "dataset" feature description (continuous first, then categorical),
# mirroring dataset.feature_split(order=FeatureOrder.cont_first)["x"] and the
# groupby on the prefix before '_'.
# ----------------------------------------------------------------------------
FEATURES = ["age", "hours", "race_0", "race_1", "race_2", "sex_0", "sex_1"]


def _group_features(features):
    groups, cur_prefix, cur = [], None, []
    for f in features:
        p = f.split("_")[0]
        if p != cur_prefix and cur:
            groups.append(cur)
            cur = []
        cur_prefix = p
        cur.append(f)
    if cur:
        groups.append(cur)
    return groups


GROUPED = _group_features(FEATURES)      # [["age"],["hours"],["race_*"x3],["sex_*"x2]]
GROUP_SIZES = [len(g) for g in GROUPED]  # [1, 1, 3, 2]
D_OUT = sum(GROUP_SIZES)                 # 7
N_CAT_COLS = sum(sz for sz in GROUP_SIZES if sz > 1)  # 5 (exp lanes per row)
LATENT_DIMS = 50
HIDDEN = 100
IN_FEATURES = LATENT_DIMS + 1            # 51

# hardware-padded sizes
HID_PAD = 128                            # hidden 100 -> 128 (lane-dense matmul operand)
OUT_PAD = 8                              # output  7  -> 8   (== full array last dim)


# ----------------------------------------------------------------------------
# Pallas kernel: one batch tile of the full decoder forward
#   matmul(50->128) + rank-1 s update + ReLU + matmul(128->8) + grouped softmax
# ----------------------------------------------------------------------------
def decoder_kernel(x_ref, s_ref, w1x_ref, w1s_ref, b1_ref, w2_ref, b2_ref, out_ref):
    # hidden = ReLU([x | s] @ W1 + b1); the s column applied as a rank-1 VPU FMA
    h = jnp.dot(x_ref[...], w1x_ref[...], preferred_element_type=jnp.float32)
    h = h + s_ref[...] * w1s_ref[...] + b1_ref[...]
    h = jnp.maximum(h, 0.0)                                            # (TB, 128)

    logits = jnp.dot(h, w2_ref[...], preferred_element_type=jnp.float32) + b2_ref[...]  # (TB, 8)

    # grouped softmax with static group structure (lane-iota masks, no matmuls)
    col = jax.lax.broadcasted_iota(jnp.int32, (1, OUT_PAD), 1)
    neg = jnp.finfo(jnp.float32).min

    shift = jnp.zeros_like(logits)              # per-row, per-group max broadcast to columns
    is_cat = jnp.zeros((1, OUT_PAD), jnp.float32)
    masks = []
    off = 0
    for sz in GROUP_SIZES:                      # static unroll (few, small groups)
        if sz > 1:
            mg = ((col >= off) & (col < off + sz)).astype(jnp.float32)   # (1, OUT_PAD)
            gmax = jnp.max(jnp.where(mg > 0, logits, neg), axis=1, keepdims=True)  # (TB, 1)
            shift = shift + mg * gmax
            is_cat = is_cat + mg
            masks.append(mg)
        off += sz

    # exp argument forced hugely negative off-group -> e == 0 exactly there (no inf anywhere)
    e = jnp.exp(jnp.where(is_cat > 0, logits - shift, neg))             # (TB, OUT_PAD)

    denom = jnp.ones_like(logits)               # 1 on continuous / padded columns
    for mg in masks:
        gsum = jnp.sum(e * mg, axis=1, keepdims=True)                   # (TB, 1)
        denom = denom + mg * (gsum - 1.0)

    inv = pl.reciprocal(denom, approx=False)    # exact reciprocal (keeps 1e-5 tol)
    out_ref[...] = jnp.where(is_cat > 0, e * inv, logits)


# ----------------------------------------------------------------------------
# One-time parameter preparation (padding / casting hoisted out of the call path)
# ----------------------------------------------------------------------------
def prepare_params(params):
    w1, b1, w2, b2 = params                     # (51,100) (1,100) (100,7) (1,7)
    hpad = HID_PAD - HIDDEN
    opad = OUT_PAD - D_OUT
    w1x = jnp.pad(w1[:LATENT_DIMS, :].astype(jnp.float32), ((0, 0), (0, hpad)))  # (50, 128)
    w1s = jnp.pad(w1[LATENT_DIMS:, :].astype(jnp.float32), ((0, 0), (0, hpad)))  # (1, 128)
    b1p = jnp.pad(b1.astype(jnp.float32), ((0, 0), (0, hpad)))                   # (1, 128)
    w2p = jnp.pad(w2.astype(jnp.float32), ((0, hpad), (0, opad)))                # (128, 8)
    b2p = jnp.pad(b2.astype(jnp.float32), ((0, 0), (0, opad)))                   # (1, 8)
    return w1x, w1s, b1p, w2p, b2p


def _round_up(n, m):
    return ((n + m - 1) // m) * m


def _choose_batch_tile(batch, batch_tile):
    # Small batches: single grid step (per-step overhead dominates any split).
    if batch <= 256:
        return batch
    # Otherwise: at least 2 grid steps (both v7x TensorCores get work via the
    # "parallel" axis), sublane-aligned, capped by batch_tile.
    return min(batch_tile, _round_up(pl.cdiv(batch, 2), 8))


# ----------------------------------------------------------------------------
# Wrapper: tile the batch and call pallas_call (expects prepared params)
# ----------------------------------------------------------------------------
def decoder_forward(x, s, prepared, *, batch_tile=1024):
    w1x, w1s, b1p, w2p, b2p = prepared
    x = x.astype(jnp.float32)
    s_col = s.reshape(-1, 1).astype(jnp.float32)
    batch = x.shape[0]

    tb = _choose_batch_tile(batch, batch_tile)
    grid = (pl.cdiv(batch, tb),)

    weight_bytes = 4 * (w1x.size + w1s.size + b1p.size + w2p.size + b2p.size)
    cost = pl.CostEstimate(
        flops=2 * batch * (LATENT_DIMS * HID_PAD + HID_PAD * OUT_PAD),
        transcendentals=batch * N_CAT_COLS,
        bytes_accessed=4 * (batch * LATENT_DIMS + batch + batch * OUT_PAD) + weight_bytes,
    )

    out_padded = pl.pallas_call(
        decoder_kernel,
        out_shape=jax.ShapeDtypeStruct((batch, OUT_PAD), jnp.float32),
        grid_spec=pltpu.PrefetchScalarGridSpec(
            num_scalar_prefetch=0,
            grid=grid,
            in_specs=[
                pl.BlockSpec((tb, LATENT_DIMS), lambda i: (i, 0)),        # x tile
                pl.BlockSpec((tb, 1), lambda i: (i, 0)),                  # s tile
                pl.BlockSpec((LATENT_DIMS, HID_PAD), lambda i: (0, 0)),   # W1[:50]  (resident)
                pl.BlockSpec((1, HID_PAD), lambda i: (0, 0)),             # W1[50:]  (resident)
                pl.BlockSpec((1, HID_PAD), lambda i: (0, 0)),             # b1       (resident)
                pl.BlockSpec((HID_PAD, OUT_PAD), lambda i: (0, 0)),       # W2       (resident)
                pl.BlockSpec((1, OUT_PAD), lambda i: (0, 0)),             # b2       (resident)
            ],
            out_specs=pl.BlockSpec((tb, OUT_PAD), lambda i: (i, 0)),      # 8-wide output
        ),
        compiler_params=pltpu.CompilerParams(
            dimension_semantics=("parallel",)),                           # megacore on v7x
        cost_estimate=cost,
    )(x, s_col, w1x, w1s, b1p, w2p, b2p)

    return out_padded[:, :D_OUT]


# ----------------------------------------------------------------------------
# Pure-JAX reference (mirrors the PyTorch module exactly)
# ----------------------------------------------------------------------------
def decoder_reference(x, s, params):
    w1, b1, w2, b2 = params
    xs = jnp.concatenate([x, s.reshape(-1, 1)], axis=1)
    h = jax.nn.relu(jnp.dot(xs, w1, precision="highest") + b1)
    logits = jnp.dot(h, w2, precision="highest") + b2
    outs, off = [], 0
    for sz in GROUP_SIZES:
        seg = logits[:, off:off + sz]
        if sz > 1:                       # Categorical: Linear + Softmax(dim=1)
            seg = jax.nn.softmax(seg, axis=1)
        outs.append(seg)
        off += sz
    return jnp.concatenate(outs, axis=1)


# ----------------------------------------------------------------------------
# Deterministic parameter init (shapes from the module's __init__)
# ----------------------------------------------------------------------------
def init_params(key):
    k1, k2, k3, k4 = jax.random.split(key, 4)
    w1 = jax.random.normal(k1, (IN_FEATURES, HIDDEN), jnp.float32) * (1.0 / jnp.sqrt(IN_FEATURES))
    b1 = jax.random.normal(k2, (1, HIDDEN), jnp.float32) * 0.01
    w2 = jax.random.normal(k3, (HIDDEN, D_OUT), jnp.float32) * (1.0 / jnp.sqrt(HIDDEN))
    b2 = jax.random.normal(k4, (1, D_OUT), jnp.float32) * 0.01
    return w1, b1, w2, b2


if __name__ == "__main__":
    key = jax.random.PRNGKey(0)
    kx, ks, kp, kx2, ks2 = jax.random.split(key, 5)
    params = init_params(kp)
    prepared = prepare_params(params)            # one-time weight padding / casting

    # small case (single grid step, tb == batch)
    batch_small = 8
    x_small = jax.random.normal(kx, (batch_small, LATENT_DIMS), jnp.float32)
    s_small = jax.random.bernoulli(ks, 0.5, (batch_small,)).astype(jnp.float32)
    out_small = jax.block_until_ready(decoder_forward(x_small, s_small, prepared))
    ref_small = decoder_reference(x_small, s_small, params)
    assert out_small.shape == (batch_small, D_OUT), out_small.shape
    assert jnp.allclose(out_small, ref_small, atol=1e-5, rtol=1e-5)

    # tiled case (grid of 2 over the batch, exercises the pipelined / megacore path)
    batch_big = 512
    x_big = jax.random.normal(kx2, (batch_big, LATENT_DIMS), jnp.float32)
    s_big = jax.random.bernoulli(ks2, 0.5, (batch_big,)).astype(jnp.float32)
    out_big = jax.block_until_ready(decoder_forward(x_big, s_big, prepared))
    ref_big = decoder_reference(x_big, s_big, params)
    assert out_big.shape == (batch_big, D_OUT), out_big.shape
    assert jnp.allclose(out_big, ref_big, atol=1e-5, rtol=1e-5)

    print("KERNEL_OK")
</pallas_src>

<mosaic_0001>
module attributes {stable_mosaic.version = 11 : i64} {
  func.func @decoder_kernel(%arg0: i32, %arg1: memref<8x50xf32, #tpu.memory_space<vmem>>, %arg2: memref<8x1xf32, #tpu.memory_space<vmem>>, %arg3: memref<50x128xf32, #tpu.memory_space<vmem>>, %arg4: memref<1x128xf32, #tpu.memory_space<vmem>>, %arg5: memref<1x128xf32, #tpu.memory_space<vmem>>, %arg6: memref<128x8xf32, #tpu.memory_space<vmem>>, %arg7: memref<1x8xf32, #tpu.memory_space<vmem>>, %arg8: memref<8x8xf32, #tpu.memory_space<vmem>>) attributes {dimension_semantics = [#tpu.dimension_semantics<parallel>], iteration_bounds = array<i64: 1>, scalar_prefetch = 0 : i64, scratch_operands = 0 : i64, tpu.core_type = #tpu.core_type<tc>, window_params = [{transform_indices = @transform_0, window_bounds = array<i64: 8, 50>}, {transform_indices = @transform_1, window_bounds = array<i64: 8, 1>}, {pipeline_mode = #tpu.pipeline_mode<synchronous>, transform_indices = @transform_2, window_bounds = array<i64: 50, 128>}, {pipeline_mode = #tpu.pipeline_mode<synchronous>, transform_indices = @transform_3, window_bounds = array<i64: 1, 128>}, {pipeline_mode = #tpu.pipeline_mode<synchronous>, transform_indices = @transform_4, window_bounds = array<i64: 1, 128>}, {pipeline_mode = #tpu.pipeline_mode<synchronous>, transform_indices = @transform_5, window_bounds = array<i64: 128, 8>}, {pipeline_mode = #tpu.pipeline_mode<synchronous>, transform_indices = @transform_6, window_bounds = array<i64: 1, 8>}, {transform_indices = @transform_7, window_bounds = array<i64: 8, 8>}]} {
    %c0 = arith.constant 0 : index
    %c0_0 = arith.constant 0 : index
    %0 = vector.load %arg1[%c0, %c0_0] : memref<8x50xf32, #tpu.memory_space<vmem>>, vector<8x50xf32>
    %c0_1 = arith.constant 0 : index
    %c0_2 = arith.constant 0 : index
    %1 = vector.load %arg3[%c0_1, %c0_2] : memref<50x128xf32, #tpu.memory_space<vmem>>, vector<50x128xf32>
    %cst = arith.constant dense<0.000000e+00> : vector<8x128xf32>
    %2 = tpu.matmul %0, %1, %cst {dimension_numbers = #tpu.dot_dimension_numbers<[1], [0], [0], [1], [0, 0, 1, 1], [], []>} : vector<8x50xf32>, vector<50x128xf32>, vector<8x128xf32> -> vector<8x128xf32>
    %c0_3 = arith.constant 0 : index
    %c0_4 = arith.constant 0 : index
    %3 = vector.load %arg2[%c0_3, %c0_4] : memref<8x1xf32, #tpu.memory_space<vmem>>, vector<8x1xf32>
    %c0_5 = arith.constant 0 : index
    %c0_6 = arith.constant 0 : index
    %4 = vector.load %arg4[%c0_5, %c0_6] : memref<1x128xf32, #tpu.memory_space<vmem>>, vector<1x128xf32>
    %5 = vector.broadcast %3 : vector<8x1xf32> to vector<8x128xf32>
    %6 = vector.broadcast %4 : vector<1x128xf32> to vector<8x128xf32>
    %7 = arith.mulf %5, %6 : vector<8x128xf32>
    %8 = arith.addf %2, %7 : vector<8x128xf32>
    %c0_7 = arith.constant 0 : index
    %c0_8 = arith.constant 0 : index
    %9 = vector.load %arg5[%c0_7, %c0_8] : memref<1x128xf32, #tpu.memory_space<vmem>>, vector<1x128xf32>
    %10 = vector.broadcast %9 : vector<1x128xf32> to vector<8x128xf32>
    %11 = arith.addf %8, %10 : vector<8x128xf32>
    %cst_9 = arith.constant 0.000000e+00 : f32
    %12 = vector.broadcast %cst_9 : f32 to vector<8x128xf32>
    %13 = arith.maximumf %11, %12 : vector<8x128xf32>
    %c0_10 = arith.constant 0 : index
    %c0_11 = arith.constant 0 : index
    %14 = vector.load %arg6[%c0_10, %c0_11] : memref<128x8xf32, #tpu.memory_space<vmem>>, vector<128x8xf32>
    %cst_12 = arith.constant dense<0.000000e+00> : vector<8x8xf32>
    %15 = tpu.matmul %13, %14, %cst_12 {dimension_numbers = #tpu.dot_dimension_numbers<[1], [0], [0], [1], [0, 0, 1, 1], [], []>} : vector<8x128xf32>, vector<128x8xf32>, vector<8x8xf32> -> vector<8x8xf32>
    %c0_13 = arith.constant 0 : index
    %c0_14 = arith.constant 0 : index
    %16 = vector.load %arg7[%c0_13, %c0_14] : memref<1x8xf32, #tpu.memory_space<vmem>>, vector<1x8xf32>
    %17 = vector.broadcast %16 : vector<1x8xf32> to vector<8x8xf32>
    %18 = arith.addf %15, %17 : vector<8x8xf32>
    %19 = tpu.iota {dimensions = array<i32: 1>} : vector<1x8xi32>
    %cst_15 = arith.constant 0.000000e+00 : f32
    %20 = vector.broadcast %cst_15 : f32 to vector<8x8xf32>
    %cst_16 = arith.constant 0.000000e+00 : f32
    %21 = vector.broadcast %cst_16 : f32 to vector<1x8xf32>
    %c2_i32 = arith.constant 2 : i32
    %22 = vector.broadcast %c2_i32 : i32 to vector<1x8xi32>
    %23 = arith.cmpi sge, %19, %22 : vector<1x8xi32>
    %c5_i32 = arith.constant 5 : i32
    %24 = vector.broadcast %c5_i32 : i32 to vector<1x8xi32>
    %25 = arith.cmpi slt, %19, %24 : vector<1x8xi32>
    %26 = arith.andi %23, %25 : vector<1x8xi1>
    %27 = arith.extui %26 : vector<1x8xi1> to vector<1x8xi32>
    %28 = arith.sitofp %27 : vector<1x8xi32> to vector<1x8xf32>
    %cst_17 = arith.constant 0.000000e+00 : f32
    %29 = vector.broadcast %cst_17 : f32 to vector<1x8xf32>
    %30 = arith.cmpf ogt, %28, %29 : vector<1x8xf32>
    %cst_18 = arith.constant -3.40282347E+38 : f32
    %31 = vector.shape_cast %30 : vector<1x8xi1> to vector<1x8xi1>
    %32 = vector.broadcast %31 : vector<1x8xi1> to vector<8x8xi1>
    %33 = vector.broadcast %cst_18 : f32 to vector<8x8xf32>
    %34 = arith.select %32, %18, %33 : vector<8x8xi1>, vector<8x8xf32>
    %cst_19 = arith.constant dense<0xFF800000> : vector<8xf32>
    %35 = vector.multi_reduction <maximumf>, %34, %cst_19 [1] : vector<8x8xf32> to vector<8xf32>
    %36 = vector.shape_cast %35 : vector<8xf32> to vector<8x1xf32>
    %37 = vector.broadcast %28 : vector<1x8xf32> to vector<8x8xf32>
    %38 = vector.broadcast %36 : vector<8x1xf32> to vector<8x8xf32>
    %39 = arith.mulf %37, %38 : vector<8x8xf32>
    %40 = arith.addf %20, %39 : vector<8x8xf32>
    %41 = arith.addf %21, %28 : vector<1x8xf32>
    %c5_i32_20 = arith.constant 5 : i32
    %42 = vector.broadcast %c5_i32_20 : i32 to vector<1x8xi32>
    %43 = arith.cmpi sge, %19, %42 : vector<1x8xi32>
    %c7_i32 = arith.constant 7 : i32
    %44 = vector.broadcast %c7_i32 : i32 to vector<1x8xi32>
    %45 = arith.cmpi slt, %19, %44 : vector<1x8xi32>
    %46 = arith.andi %43, %45 : vector<1x8xi1>
    %47 = arith.extui %46 : vector<1x8xi1> to vector<1x8xi32>
    %48 = arith.sitofp %47 : vector<1x8xi32> to vector<1x8xf32>
    %cst_21 = arith.constant 0.000000e+00 : f32
    %49 = vector.broadcast %cst_21 : f32 to vector<1x8xf32>
    %50 = arith.cmpf ogt, %48, %49 : vector<1x8xf32>
    %cst_22 = arith.constant -3.40282347E+38 : f32
    %51 = vector.shape_cast %50 : vector<1x8xi1> to vector<1x8xi1>
    %52 = vector.broadcast %51 : vector<1x8xi1> to vector<8x8xi1>
    %53 = vector.broadcast %cst_22 : f32 to vector<8x8xf32>
    %54 = arith.select %52, %18, %53 : vector<8x8xi1>, vector<8x8xf32>
    %cst_23 = arith.constant dense<0xFF800000> : vector<8xf32>
    %55 = vector.multi_reduction <maximumf>, %54, %cst_23 [1] : vector<8x8xf32> to vector<8xf32>
    %56 = vector.shape_cast %55 : vector<8xf32> to vector<8x1xf32>
    %57 = vector.broadcast %48 : vector<1x8xf32> to vector<8x8xf32>
    %58 = vector.broadcast %56 : vector<8x1xf32> to vector<8x8xf32>
    %59 = arith.mulf %57, %58 : vector<8x8xf32>
    %60 = arith.addf %40, %59 : vector<8x8xf32>
    %61 = arith.addf %41, %48 : vector<1x8xf32>
    %cst_24 = arith.constant 0.000000e+00 : f32
    %62 = vector.broadcast %cst_24 : f32 to vector<1x8xf32>
    %63 = arith.cmpf ogt, %61, %62 : vector<1x8xf32>
    %64 = arith.subf %18, %60 : vector<8x8xf32>
    %cst_25 = arith.constant -3.40282347E+38 : f32
    %65 = vector.shape_cast %63 : vector<1x8xi1> to vector<1x8xi1>
    %66 = vector.broadcast %65 : vector<1x8xi1> to vector<8x8xi1>
    %67 = vector.broadcast %cst_25 : f32 to vector<8x8xf32>
    %68 = arith.select %66, %64, %67 : vector<8x8xi1>, vector<8x8xf32>
    %69 = math.exp %68 : vector<8x8xf32>
    %cst_26 = arith.constant 1.000000e+00 : f32
    %70 = vector.broadcast %cst_26 : f32 to vector<8x8xf32>
    %71 = vector.broadcast %28 : vector<1x8xf32> to vector<8x8xf32>
    %72 = arith.mulf %69, %71 : vector<8x8xf32>
    %cst_27 = arith.constant dense<0.000000e+00> : vector<8xf32>
    %73 = vector.multi_reduction <add>, %72, %cst_27 [1] : vector<8x8xf32> to vector<8xf32>
    %74 = vector.shape_cast %73 : vector<8xf32> to vector<8x1xf32>
    %cst_28 = arith.constant 1.000000e+00 : f32
    %75 = vector.broadcast %cst_28 : f32 to vector<8x1xf32>
    %76 = arith.subf %74, %75 : vector<8x1xf32>
    %77 = vector.broadcast %28 : vector<1x8xf32> to vector<8x8xf32>
    %78 = vector.broadcast %76 : vector<8x1xf32> to vector<8x8xf32>
    %79 = arith.mulf %77, %78 : vector<8x8xf32>
    %80 = arith.addf %70, %79 : vector<8x8xf32>
    %81 = vector.broadcast %48 : vector<1x8xf32> to vector<8x8xf32>
    %82 = arith.mulf %69, %81 : vector<8x8xf32>
    %cst_29 = arith.constant dense<0.000000e+00> : vector<8xf32>
    %83 = vector.multi_reduction <add>, %82, %cst_29 [1] : vector<8x8xf32> to vector<8xf32>
    %84 = vector.shape_cast %83 : vector<8xf32> to vector<8x1xf32>
    %cst_30 = arith.constant 1.000000e+00 : f32
    %85 = vector.broadcast %cst_30 : f32 to vector<8x1xf32>
    %86 = arith.subf %84, %85 : vector<8x1xf32>
    %87 = vector.broadcast %48 : vector<1x8xf32> to vector<8x8xf32>
    %88 = vector.broadcast %86 : vector<8x1xf32> to vector<8x8xf32>
    %89 = arith.mulf %87, %88 : vector<8x8xf32>
    %90 = arith.addf %80, %89 : vector<8x8xf32>
    %91 = tpu.reciprocal %90 : vector<8x8xf32> -> vector<8x8xf32>
    %cst_31 = arith.constant 0.000000e+00 : f32
    %92 = vector.broadcast %cst_31 : f32 to vector<1x8xf32>
    %93 = arith.cmpf ogt, %61, %92 : vector<1x8xf32>
    %94 = arith.mulf %69, %91 : vector<8x8xf32>
    %95 = vector.shape_cast %93 : vector<1x8xi1> to vector<1x8xi1>
    %96 = vector.broadcast %95 : vector<1x8xi1> to vector<8x8xi1>
    %97 = arith.select %96, %94, %18 : vector<8x8xi1>, vector<8x8xf32>
    %c0_32 = arith.constant 0 : index
    %c0_33 = arith.constant 0 : index
    %98 = vector.load %arg8[%c0_32, %c0_33] : memref<8x8xf32, #tpu.memory_space<vmem>>, vector<8x8xf32>
    tpu.vector_store %arg8[%c0_32, %c0_33], %97 {strides = array<i32>} : memref<8x8xf32, #tpu.memory_space<vmem>>, vector<8x8xf32>,
    return
  }
  func.func @transform_0(%arg0: i32) -> (i32, i32) {
    %c0_i32 = arith.constant 0 : i32
    %c0_i32_0 = arith.constant 0 : i32
    return %arg0, %c0_i32 : i32, i32
  }
  func.func @transform_1(%arg0: i32) -> (i32, i32) {
    %c0_i32 = arith.constant 0 : i32
    %c0_i32_0 = arith.constant 0 : i32
    return %arg0, %c0_i32 : i32, i32
  }
  func.func @transform_2(%arg0: i32) -> (i32, i32) {
    %c0_i32 = arith.constant 0 : i32
    %c0_i32_0 = arith.constant 0 : i32
    %c0_i32_1 = arith.constant 0 : i32
    return %c0_i32, %c0_i32_0 : i32, i32
  }
  func.func @transform_3(%arg0: i32) -> (i32, i32) {
    %c0_i32 = arith.constant 0 : i32
    %c0_i32_0 = arith.constant 0 : i32
    %c0_i32_1 = arith.constant 0 : i32
    return %c0_i32, %c0_i32_0 : i32, i32
  }
  func.func @transform_4(%arg0: i32) -> (i32, i32) {
    %c0_i32 = arith.constant 0 : i32
    %c0_i32_0 = arith.constant 0 : i32
    %c0_i32_1 = arith.constant 0 : i32
    return %c0_i32, %c0_i32_0 : i32, i32
  }
  func.func @transform_5(%arg0: i32) -> (i32, i32) {
    %c0_i32 = arith.constant 0 : i32
    %c0_i32_0 = arith.constant 0 : i32
    %c0_i32_1 = arith.constant 0 : i32
    return %c0_i32, %c0_i32_0 : i32, i32
  }
  func.func @transform_6(%arg0: i32) -> (i32, i32) {
    %c0_i32 = arith.constant 0 : i32
    %c0_i32_0 = arith.constant 0 : i32
    %c0_i32_1 = arith.constant 0 : i32
    return %c0_i32, %c0_i32_0 : i32, i32
  }
  func.func @transform_7(%arg0: i32) -> (i32, i32) {
    %c0_i32 = arith.constant 0 : i32
    %c0_i32_0 = arith.constant 0 : i32
    return %arg0, %c0_i32 : i32, i32
  }
}

</mosaic_0001>

<llo_original>
// kernel: tpu_custom_call.1
$region0: #{tpu_custom_call.1}
  #allocation0 [shape = 'u32[]', space=smem, size = 0x4, offset = 0x4, fixed_abs, tag = 'smem constant byte address 0x4 - core index']
  #allocation1 [shape = 'u32[144,128]{1,0:T(1,128)}', space=vmem, size = 0x12000, scoped, tag = 'internal scratch']
  %s0 = inlined_call_operand.vmem [shape: f32[8,50], index: 0, kind: input, shape index: {}]
  %s1 = inlined_call_operand.vmem [shape: f32[8,1], index: 1, kind: input, shape index: {}]
  %s2 = inlined_call_operand.vmem [shape: f32[50,128], index: 2, kind: input, shape index: {}]
  %s3 = inlined_call_operand.vmem [shape: f32[1,128], index: 3, kind: input, shape index: {}]
  %s4 = inlined_call_operand.vmem [shape: f32[1,128], index: 4, kind: input, shape index: {}]
  %s5 = inlined_call_operand.vmem [shape: f32[128,8], index: 5, kind: input, shape index: {}]
  %s6 = inlined_call_operand.vmem [shape: f32[1,8], index: 6, kind: input, shape index: {}]
  %s7 = inlined_call_operand.hbm [shape: f32[8,8], index: 7, kind: output, shape index: {}]
  %s8 = sld [smem:[#allocation0]]
  $region38: #{tpu_custom_call.1} parent=0
    _
  %s10 = ssub.s32 1, %s8
  %s11 = scalar_select 0, %s10, %s8
  $region1: #{tpu_custom_call.1} parent=0
    #allocation2 [shape = 'u8[4096]{0}', space=vmem, size = 0x1000, scoped, tag = 'output window, operand 0, single buffered']
    #allocation3 [shape = 's32[1]{0}', space=sflag, size = 0x4, scoped, tag = 'scoped memory for tpu_custom_call.1']
    %12 = vsyncpa [#allocation3], 0
    // Predicated region
    $region2: #{tpu_custom_call.1} parent=1 // pred_check
      _
    $region3: #{tpu_custom_call.1} parent=1 // pred_check_branch
      %14 = sbr.rel (0) target = $region5
    $region4: #{tpu_custom_call.1} parent=1 // pred_region
      _
    $region5: #{tpu_custom_call.1} parent=1 // pred_fallthru
      _
    // Predicated region
    $region6: #{tpu_custom_call.1} parent=1 // pred_check
      _
    $region7: #{tpu_custom_call.1} parent=1 // pred_check_branch
      %16 = sbr.rel (0) target = $region9
    $region8: #{tpu_custom_call.1} parent=1 // pred_region
      _
    $region9: #{tpu_custom_call.1} parent=1 // pred_fallthru
      _
    // Predicated region
    $region10: #{tpu_custom_call.1} parent=1 // pred_check
      _
    $region11: #{tpu_custom_call.1} parent=1 // pred_check_branch
      %18 = sbr.rel (0) target = $region13
    $region12: #{tpu_custom_call.1} parent=1 // pred_region
      _
    $region13: #{tpu_custom_call.1} parent=1 // pred_fallthru
      _
    // Predicated region
    $region14: #{tpu_custom_call.1} parent=1 // pred_check
      _
    $region15: #{tpu_custom_call.1} parent=1 // pred_check_branch
      %20 = sbr.rel (0) target = $region17
    $region16: #{tpu_custom_call.1} parent=1 // pred_region
      _
    $region17: #{tpu_custom_call.1} parent=1 // pred_fallthru
      _
    // Predicated region
    $region18: #{tpu_custom_call.1} parent=1 // pred_check
      _
    $region19: #{tpu_custom_call.1} parent=1 // pred_check_branch
      %22 = sbr.rel (0) target = $region21
    $region20: #{tpu_custom_call.1} parent=1 // pred_region
      _
    $region21: #{tpu_custom_call.1} parent=1 // pred_fallthru
      _
    // Predicated region
    $region22: #{tpu_custom_call.1} parent=1 // pred_check
      _
    $region23: #{tpu_custom_call.1} parent=1 // pred_check_branch
      %24 = sbr.rel (0) target = $region25
    $region24: #{tpu_custom_call.1} parent=1 // pred_region
      _
    $region25: #{tpu_custom_call.1} parent=1 // pred_fallthru
      _
    // Predicated region
    $region26: #{tpu_custom_call.1} parent=1 // pred_check
      _
    $region27: #{tpu_custom_call.1} parent=1 // pred_check_branch
      %26 = sbr.rel (0) target = $region29
    $region28: #{tpu_custom_call.1} parent=1 // pred_region
      _
    $region29: #{tpu_custom_call.1} parent=1 // pred_fallthru
      _
    %v27 = vld [vmem:[%s0] sm:$0xff]
    %v28 = vld [vmem:[%s2] sm:$0xff]
    %v29 = vld [vmem:[%s2 + $0x8] sm:$0xff]
    %v30 = vld [vmem:[%s2 + $0x10] sm:$0xff]
    %v31 = vld [vmem:[%s2 + $0x18] sm:$0xff]
    %v32 = vld [vmem:[%s2 + $0x20] sm:$0xff]
    %v33 = vld [vmem:[%s2 + $0x28] sm:$0xff]
    %v34 = vld [vmem:[%s2 + $0x30] sm:$0x3]
    %v35 = vld [vmem:[%s1] sm:$0xff]
    %v36 = vld [vmem:[%s3] sm:$0x1]
    %38 = vset.pattern.permute.xlu0 0
    %39 = vperm.xlu0 %38, %v35
    %v40 = vpop.permute.xlu0 %39
    %v43 = vlaneseq
    %v44 = vshrl.u32 %v43, 7
    %v45 = vsub.s32 0, %v44
    %v46 = vrot.slane %v36, %v45
    %v48 = vmul.f32 %v40, %v46
    %vm49 = vcmask 408576
    %v51 = vsel %vm49, %v27, 0
    %vm53 = vcmask 1041408
    %v55 = vsel %vm53, %v34, 0
    %57 = vmatprep.subr.mxu0 0.0
    %58 = vmatpush1.msra.mxu0 %v28
    %59 = vmatprep.subr.mxu0 0.0
    %60 = vmatpush1.msra.mxu0 %v29
    %61 = vmatprep.subr.mxu0 0.0
    %62 = vmatpush1.msra.mxu0 %v30
    %63 = vmatprep.subr.mxu0 0.0
    %64 = vmatpush1.msra.mxu0 %v31
    %65 = vmatprep.subr.mxu0 0.0
    %66 = vmatpush1.msra.mxu0 %v32
    %67 = vmatprep.subr.mxu0 0.0
    %68 = vmatpush1.msra.mxu0 %v33
    %69 = vmatprep.subr.mxu0 0.0
    %70 = vmatpush1.msra.mxu0 %v55
    %71 = vmatprep.subr.mxu0 0.0
    %72 = vmatpush1.msra.mxu0 0.0
    %73 = vmatprep.subr.mxu0 0.0
    %74 = vmatpush1.msra.mxu0 0.0
    %75 = vmatprep.subr.mxu0 0.0
    %76 = vmatpush1.msra.mxu0 0.0
    %77 = vmatprep.subr.mxu0 0.0
    %78 = vmatpush1.msra.mxu0 0.0
    %79 = vmatprep.subr.mxu0 0.0
    %80 = vmatpush1.msra.mxu0 0.0
    %81 = vmatprep.subr.mxu0 0.0
    %82 = vmatpush1.msra.mxu0 0.0
    %83 = vmatprep.subr.mxu0 0.0
    %84 = vmatpush1.msra.mxu0 0.0
    %85 = vmatprep.subr.mxu0 0.0
    %86 = vmatpush1.msra.mxu0 0.0
    %87 = vmatprep.subr.mxu0 0.0
    %88 = vmatpush1.msra.mxu0 0.0
    %89 = vmatprep.subr.mxu0 0.0
    %90 = vmatpush1.msra.mxu0 0.0
    %91 = vmatprep.subr.mxu0 0.0
    %92 = vmatpush1.msra.mxu0 0.0
    %93 = vmatprep.subr.mxu0 0.0
    %94 = vmatpush1.msra.mxu0 0.0
    %95 = vmatprep.subr.mxu0 0.0
    %96 = vmatpush1.msra.mxu0 0.0
    %97 = vmatprep.subr.mxu0 0.0
    %98 = vmatpush1.msra.mxu0 0.0
    %99 = vmatprep.subr.mxu0 0.0
    %100 = vmatpush1.msra.mxu0 0.0
    %101 = vmatprep.subr.mxu0 0.0
    %102 = vmatpush1.msra.mxu0 0.0
    %103 = vmatprep.subr.mxu0 0.0
    %104 = vmatpush1.msra.mxu0 0.0
    %105 = vmatprep.subr.mxu0 0.0
    %106 = vmatpush1.msra.mxu0 0.0
    %107 = vmatprep.subr.mxu0 0.0
    %108 = vmatpush1.msra.mxu0 0.0
    %109 = vmatprep.subr.mxu0 0.0
    %110 = vmatpush1.msra.mxu0 0.0
    %111 = vmatprep.subr.mxu0 0.0
    %112 = vmatpush1.msra.mxu0 0.0
    %113 = vmatprep.subr.mxu0 0.0
    %114 = vmatpush1.msra.mxu0 0.0
    %115 = vmatprep.subr.mxu0 0.0
    %116 = vmatpush1.msra.mxu0 0.0
    %117 = vmatprep.subr.mxu0 0.0
    %118 = vmatpush1.msra.mxu0 0.0
    %119 = vmatprep.subr.mxu0 0.0
    %120 = vmatpush1.msra.mxu0 0.0
    %121 = vmatprep.mubr.f32.mxu0 0.0
    %122 = vmatmul.mubr.f32.gmra.mrb[0].mxu0 %v51
    %v123 = vpop.f32.mrb[0].mxu0
    %v124 = vadd.f32 %v48, %v123
    %v125 = vpop.f32.mrb[0].mxu0
    %126 = vdwg.mxu0
    %v127 = vld [vmem:[%s4] sm:$0x1]
    %v129 = vlaneseq
    %v130 = vshrl.u32 %v129, 7
    %v131 = vsub.s32 0, %v130
    %v132 = vrot.slane %v127, %v131
    %v134 = vadd.f32 %v124, %v132
    %v135 = vmax.f32 %v134, 0.0
    %v136 = vld [vmem:[%s5] sm:$0xff]
    %v137 = vld [vmem:[%s5 + $0x8] sm:$0xff]
    %v138 = vld [vmem:[%s5 + $0x10] sm:$0xff]
    %v139 = vld [vmem:[%s5 + $0x18] sm:$0xff]
    %v140 = vld [vmem:[%s5 + $0x20] sm:$0xff]
    %v141 = vld [vmem:[%s5 + $0x28] sm:$0xff]
    %v142 = vld [vmem:[%s5 + $0x30] sm:$0xff]
    %v143 = vld [vmem:[%s5 + $0x38] sm:$0xff]
    %v144 = vld [vmem:[%s5 + $0x40] sm:$0xff]
    %v145 = vld [vmem:[%s5 + $0x48] sm:$0xff]
    %v146 = vld [vmem:[%s5 + $0x50] sm:$0xff]
    %v147 = vld [vmem:[%s5 + $0x58] sm:$0xff]
    %v148 = vld [vmem:[%s5 + $0x60] sm:$0xff]
    %v149 = vld [vmem:[%s5 + $0x68] sm:$0xff]
    %v150 = vld [vmem:[%s5 + $0x70] sm:$0xff]
    %v151 = vld [vmem:[%s5 + $0x78] sm:$0xff]
    %v152 = vld [vmem:[%s6] sm:$0x1]
    %v154 = vlaneseq
    %v155 = vshrl.u32 %v154, 7
    %v156 = vsub.s32 0, %v155
    %v157 = vrot.slane %v152, %v156
    %159 = vmatprep.subr.mxu0 0.0
    %160 = vmatpush1.msra.mxu0 %v136
    %161 = vmatprep.subr.mxu0 0.0
    %162 = vmatpush1.msra.mxu0 %v137
    %163 = vmatprep.subr.mxu0 0.0
    %164 = vmatpush1.msra.mxu0 %v138
    %165 = vmatprep.subr.mxu0 0.0
    %166 = vmatpush1.msra.mxu0 %v139
    %167 = vmatprep.subr.mxu0 0.0
    %168 = vmatpush1.msra.mxu0 %v140
    %169 = vmatprep.subr.mxu0 0.0
    %170 = vmatpush1.msra.mxu0 %v141
    %171 = vmatprep.subr.mxu0 0.0
    %172 = vmatpush1.msra.mxu0 %v142
    %173 = vmatprep.subr.mxu0 0.0
    %174 = vmatpush1.msra.mxu0 %v143
    %175 = vmatprep.subr.mxu0 0.0
    %176 = vmatpush1.msra.mxu0 %v144
    %177 = vmatprep.subr.mxu0 0.0
    %178 = vmatpush1.msra.mxu0 %v145
    %179 = vmatprep.subr.mxu0 0.0
    %180 = vmatpush1.msra.mxu0 %v146
    %181 = vmatprep.subr.mxu0 0.0
    %182 = vmatpush1.msra.mxu0 %v147
    %183 = vmatprep.subr.mxu0 0.0
    %184 = vmatpush1.msra.mxu0 %v148
    %185 = vmatprep.subr.mxu0 0.0
    %186 = vmatpush1.msra.mxu0 %v149
    %187 = vmatprep.subr.mxu0 0.0
    %188 = vmatpush1.msra.mxu0 %v150
    %189 = vmatprep.subr.mxu0 0.0
    %190 = vmatpush1.msra.mxu0 %v151
    %191 = vmatprep.subr.mxu0 0.0
    %192 = vmatpush1.msra.mxu0 0.0
    %193 = vmatprep.subr.mxu0 0.0
    %194 = vmatpush1.msra.mxu0 0.0
    %195 = vmatprep.subr.mxu0 0.0
    %196 = vmatpush1.msra.mxu0 0.0
    %197 = vmatprep.subr.mxu0 0.0
    %198 = vmatpush1.msra.mxu0 0.0
    %199 = vmatprep.subr.mxu0 0.0
    %200 = vmatpush1.msra.mxu0 0.0
    %201 = vmatprep.subr.mxu0 0.0
    %202 = vmatpush1.msra.mxu0 0.0
    %203 = vmatprep.subr.mxu0 0.0
    %204 = vmatpush1.msra.mxu0 0.0
    %205 = vmatprep.subr.mxu0 0.0
    %206 = vmatpush1.msra.mxu0 0.0
    %207 = vmatprep.subr.mxu0 0.0
    %208 = vmatpush1.msra.mxu0 0.0
    %209 = vmatprep.subr.mxu0 0.0
    %210 = vmatpush1.msra.mxu0 0.0
    %211 = vmatprep.subr.mxu0 0.0
    %212 = vmatpush1.msra.mxu0 0.0
    %213 = vmatprep.subr.mxu0 0.0
    %214 = vmatpush1.msra.mxu0 0.0
    %215 = vmatprep.subr.mxu0 0.0
    %216 = vmatpush1.msra.mxu0 0.0
    %217 = vmatprep.subr.mxu0 0.0
    %218 = vmatpush1.msra.mxu0 0.0
    %219 = vmatprep.subr.mxu0 0.0
    %220 = vmatpush1.msra.mxu0 0.0
    %221 = vmatprep.subr.mxu0 0.0
    %222 = vmatpush1.msra.mxu0 0.0
    %223 = vmatprep.mubr.f32.mxu0 0.0
    %224 = vmatmul.mubr.f32.gmra.mrb[0].mxu0 %v135
    %v225 = vpop.f32.mrb[0].mxu0
    %v226 = vadd.f32 %v157, %v225
    %v227 = vpop.f32.mrb[0].mxu0
    %228 = vdwg.mxu0
    %v229 = vlaneseq
    %v230 = vand.u32 %v229, 127
    %vm231 = vcmp.ge.s32.totalorder %v230, 2
    %vm232 = vcmp.lt.s32.totalorder %v230, 5
    %vm233 = vmand %vm231, %vm232
    %v234 = vsel %vm233, 1, 0
    %v235 = vcvt.s32.f32 %v234
    %vm236 = vcmp.gt.f32.partialorder %v235, 0.0
    %v237 = vsel %vm236, 1, 0
    %vm238 = vcmp.eq.s32.totalorder %v237, 1
    %v239 = vsel %vm238, %v226, -3.4028235e+38
    %vm240 = vcmask 64512
    %v241 = vsel %vm240, %v239, -inf
    %242 = vmax.xlane.f32.xlu0 %v241
    %v243 = vpop.xlane.xlu0 %242
    %v244 = vmul.f32 %v235, %v243
    %v245 = vadd.f32 %v244, 0.0
    %v246 = vadd.f32 %v235, 0.0
    %vm247 = vcmp.ge.s32.totalorder %v230, 5
    %vm248 = vcmp.lt.s32.totalorder %v230, 7
    %vm249 = vmand %vm247, %vm248
    %v250 = vsel %vm249, 1, 0
    %v251 = vcvt.s32.f32 %v250
    %vm252 = vcmp.gt.f32.partialorder %v251, 0.0
    %v253 = vsel %vm252, 1, 0
    %vm254 = vcmp.eq.s32.totalorder %v253, 1
    %v255 = vsel %vm254, %v226, -3.4028235e+38
    %v256 = vsel %vm240, %v255, -inf
    %257 = vmax.xlane.f32.xlu0 %v256
    %v258 = vpop.xlane.xlu0 %257
    %v259 = vmul.f32 %v251, %v258
    %v260 = vadd.f32 %v245, %v259
    %v261 = vadd.f32 %v246, %v251
    %vm262 = vcmp.gt.f32.partialorder %v261, 0.0
    %v263 = vsub.f32 %v226, %v260
    %v264 = vsel %vm262, 1, 0
    %vm265 = vcmp.eq.s32.totalorder %v264, 1
    %v266 = vsel %vm265, %v263, -3.4028235e+38
    %v267 = vmul.f32 %v266, 1.442695
    %v268 = vpow.pop %v267
    %v269 = vmul.f32 %v268, %v235
    %v270 = vsel %vm240, %v269, 0.0
    %271 = vadd.xlane.f32.xlu0 %v270
    %v272 = vpop.xlane.xlu0 %271
    %v273 = vsub.f32 %v272, 1.0
    %v274 = vmul.f32 %v235, %v273
    %v275 = vadd.f32 %v274, 1.0
    %v276 = vmul.f32 %v268, %v251
    %v277 = vsel %vm240, %v276, 0.0
    %278 = vadd.xlane.f32.xlu0 %v277
    %v279 = vpop.xlane.xlu0 %278
    %v280 = vsub.f32 %v279, 1.0
    %v281 = vmul.f32 %v251, %v280
    %v282 = vadd.f32 %v275, %v281
    %v283 = vrcp.pop %v282
    %v284 = vmul.f32 %v268, %v283
    %v285 = vsel %vm265, %v284, %v226
    %286 = vst.msk [vmem:[#allocation2] sm:$0xff] %vm240, %v285
    // Predicated region
    $region30: #{tpu_custom_call.1} parent=1 // pred_check
      _
    $region31: #{tpu_custom_call.1} parent=1 // pred_check_branch
      %288 = sbr.rel (0) target = $region33
    $region32: #{tpu_custom_call.1} parent=1 // pred_region
      %s290 = ssub.s32 128, 128
      %291 = vsyncadd [#allocation3], %s290
      %s293 = sshll.u32 [#allocation2], 4
      %s294 = int_to_ptr.vmem [resolvable:$true] %s293
      %296 = dma.vmem_to_hbm [thread:$0]  %s294, 128, %s7, [#allocation3]
    $region33: #{tpu_custom_call.1} parent=1 // pred_fallthru
      _
    // Predicated region
    $region34: #{tpu_custom_call.1} parent=1 // pred_check
      _
    $region35: #{tpu_custom_call.1} parent=1 // pred_check_branch
      %298 = sbr.rel (0) target = $region37
    $region36: #{tpu_custom_call.1} parent=1 // pred_region
      %299 = dma.done [#allocation3], 128
    $region37: #{tpu_custom_call.1} parent=1 // pred_fallthru
      _
    %300 = vsyncpa [#allocation3], 1

</llo_original>
